<compile_context>
chip_gen: v7x
topology: tpu7x:2x2x1
jax: 0.10.0
libtpu: 0.0.40
codegen_flags: <defaults>
</compile_context>

<pallas_src>
import functools

import jax
import jax.numpy as jnp
from jax.experimental import pallas as pl
from jax.experimental.pallas import tpu as pltpu


def _ae_kernel(x_ref, w1_ref, b1_ref, w2_ref, b2_ref, enc_ref, dec_ref):
    # x / w1 / w2 arrive as bf16 (MXU-native); biases are f32.
    x = x_ref[...]                                                        # (tb, indim) bf16
    h = jnp.dot(x, w1_ref[...], preferred_element_type=jnp.float32)       # f32 accumulate
    enc_f32 = jax.nn.sigmoid(h + b1_ref[...])                             # f32 sigmoid (EUP)
    enc_ref[...] = enc_f32.astype(enc_ref.dtype)                          # (tb, outdim)
    d = jnp.dot(enc_f32.astype(jnp.bfloat16), w2_ref[...],                # bf16 MXU feed-back
                preferred_element_type=jnp.float32)
    dec_ref[...] = jax.nn.sigmoid(d + b2_ref[...]).astype(dec_ref.dtype)  # (tb, indim)


def _round_up(x, m):
    return ((x + m - 1) // m) * m


@functools.partial(jax.jit, static_argnames=("tb",))
def simple_auto_encoder(x, w_enc, b_enc, w_dec, b_dec, *, tb=256):
    """x: (B, indim). w_enc: (outdim, indim), b_enc: (outdim,),
    w_dec: (indim, outdim), b_dec: (indim,)  -- PyTorch nn.Linear conventions."""
    B, indim = x.shape
    outdim = w_enc.shape[0]
    out_dtype = x.dtype
    out_itemsize = x.dtype.itemsize

    # ---- batch-tile selection (static; shapes are trace-time constants) -----
    tb = max(8, (int(tb) // 8) * 8)
    if B <= tb:
        tb_eff = _round_up(B, 8)                       # one tile covers the batch
    elif B <= 2 * tb:
        tb_eff = _round_up((B + 1) // 2, 8)            # keep >=2 grid steps (v7x: 2 TCs)
    else:
        tb_eff = tb
    B_pad = _round_up(B, tb_eff)
    grid = (B_pad // tb_eff,)

    # ---- operand prep (glue, plain JAX) --------------------------------------
    x_p = jnp.pad(x, ((0, B_pad - B), (0, 0))) if B_pad != B else x
    x_bf = x_p.astype(jnp.bfloat16)
    w1 = w_enc.T.astype(jnp.bfloat16)                  # (indim, outdim)
    w2 = w_dec.T.astype(jnp.bfloat16)                  # (outdim, indim)
    b1 = b_enc.reshape(1, outdim).astype(jnp.float32)
    b2 = b_dec.reshape(1, indim).astype(jnp.float32)

    # ---- VMEM budget (weights single-buffered, activation tiles double-buffered)
    w_bytes = 2 * indim * outdim * 2                           # both bf16 weights, 1 buf each
    b_bytes = 2 * (indim + outdim) * 4                         # f32 biases (2 bufs, tiny)
    tile_bytes = 2 * tb_eff * (indim * 2                       # x tile (bf16)
                               + outdim * out_itemsize         # enc tile out
                               + indim * out_itemsize          # dec tile out
                               + (indim + outdim) * 4)         # f32 intermediates slack
    vmem_limit = int(min(max(int((w_bytes + b_bytes + tile_bytes) * 1.5) + (4 << 20),
                             32 << 20),
                         64 << 20))

    cost = pl.CostEstimate(
        flops=4 * B_pad * indim * outdim,                      # two matmuls, 2*M*N*K each
        transcendentals=B_pad * (indim + outdim),              # one exp per sigmoid element
        bytes_accessed=(B_pad * indim * 2                      # x in (bf16)
                        + 2 * indim * outdim * 2               # weights (bf16)
                        + (indim + outdim) * 4                 # biases
                        + B_pad * outdim * out_itemsize        # enc out
                        + B_pad * indim * out_itemsize),       # dec out
    )

    enc, dec = pl.pallas_call(
        _ae_kernel,
        out_shape=(
            jax.ShapeDtypeStruct((B_pad, outdim), out_dtype),
            jax.ShapeDtypeStruct((B_pad, indim), out_dtype),
        ),
        grid_spec=pltpu.PrefetchScalarGridSpec(
            num_scalar_prefetch=0,
            grid=grid,
            in_specs=[
                pl.BlockSpec((tb_eff, indim), lambda i: (i, 0)),             # x tile
                pl.BlockSpec((indim, outdim), lambda i: (0, 0),              # W_enc^T resident
                             pipeline_mode=pl.Buffered(1)),
                pl.BlockSpec((1, outdim), lambda i: (0, 0),                  # b_enc resident
                             pipeline_mode=pl.Buffered(1)),
                pl.BlockSpec((outdim, indim), lambda i: (0, 0),              # W_dec^T resident
                             pipeline_mode=pl.Buffered(1)),
                pl.BlockSpec((1, indim), lambda i: (0, 0),                   # b_dec resident
                             pipeline_mode=pl.Buffered(1)),
            ],
            out_specs=[
                pl.BlockSpec((tb_eff, outdim), lambda i: (i, 0)),
                pl.BlockSpec((tb_eff, indim), lambda i: (i, 0)),
            ],
        ),
        compiler_params=pltpu.CompilerParams(
            dimension_semantics=("parallel",),
            vmem_limit_bytes=vmem_limit,
        ),
        cost_estimate=cost,
    )(x_bf, w1, b1, w2, b2)

    if B_pad != B:
        enc = enc[:B]
        dec = dec[:B]
    return enc, dec


def _init_linear(key, out_features, in_features, dtype=jnp.float32):
    # Deterministic init mirroring nn.Linear's U(-1/sqrt(in), 1/sqrt(in)).
    kw, kb = jax.random.split(key)
    bound = 1.0 / jnp.sqrt(jnp.float32(in_features))
    w = jax.random.uniform(kw, (out_features, in_features), dtype, -bound, bound)
    b = jax.random.uniform(kb, (out_features,), dtype, -bound, bound)
    return w, b


if __name__ == "__main__":
    key = jax.random.PRNGKey(0)
    k_x, k_enc, k_dec = jax.random.split(key, 3)

    # Small, but exercises the padding / remainder path (20 is not a multiple of 8).
    batch, indim, outdim = 20, 256, 128

    x = jax.random.normal(k_x, (batch, indim), jnp.float32)
    w_enc, b_enc = _init_linear(k_enc, outdim, indim)   # Encoder.linear1
    w_dec, b_dec = _init_linear(k_dec, indim, outdim)   # Decoder.linear1

    enc, dec = simple_auto_encoder(x, w_enc, b_enc, w_dec, b_dec)
    jax.block_until_ready((enc, dec))

    # Reference check (plain f32 JAX). bf16 MXU operands -> ~1e-2 tolerance.
    enc_ref = jax.nn.sigmoid(x @ w_enc.T + b_enc)
    dec_ref = jax.nn.sigmoid(enc_ref @ w_dec.T + b_dec)
    assert enc.shape == (batch, outdim) and dec.shape == (batch, indim)
    assert jnp.allclose(enc, enc_ref, atol=2e-2), "encoded mismatch"
    assert jnp.allclose(dec, dec_ref, atol=2e-2), "decoded mismatch"

    print("KERNEL_OK")
</pallas_src>

<mosaic_0001>
module attributes {stable_mosaic.version = 11 : i64} {
  func.func @_ae_kernel(%arg0: i32, %arg1: memref<24x256xbf16, #tpu.memory_space<vmem>>, %arg2: memref<256x128xbf16, #tpu.memory_space<vmem>>, %arg3: memref<1x128xf32, #tpu.memory_space<vmem>>, %arg4: memref<128x256xbf16, #tpu.memory_space<vmem>>, %arg5: memref<1x256xf32, #tpu.memory_space<vmem>>, %arg6: memref<24x128xf32, #tpu.memory_space<vmem>>, %arg7: memref<24x256xf32, #tpu.memory_space<vmem>>) attributes {dimension_semantics = [#tpu.dimension_semantics<parallel>], iteration_bounds = array<i64: 1>, scalar_prefetch = 0 : i64, scratch_operands = 0 : i64, tpu.core_type = #tpu.core_type<tc>, window_params = [{transform_indices = @transform_0, window_bounds = array<i64: 24, 256>}, {pipeline_mode = #tpu.pipeline_mode<synchronous>, transform_indices = @transform_1, window_bounds = array<i64: 256, 128>}, {pipeline_mode = #tpu.pipeline_mode<synchronous>, transform_indices = @transform_2, window_bounds = array<i64: 1, 128>}, {pipeline_mode = #tpu.pipeline_mode<synchronous>, transform_indices = @transform_3, window_bounds = array<i64: 128, 256>}, {pipeline_mode = #tpu.pipeline_mode<synchronous>, transform_indices = @transform_4, window_bounds = array<i64: 1, 256>}, {transform_indices = @transform_5, window_bounds = array<i64: 24, 128>}, {transform_indices = @transform_6, window_bounds = array<i64: 24, 256>}]} {
    %c0 = arith.constant 0 : index
    %c0_0 = arith.constant 0 : index
    %0 = vector.load %arg1[%c0, %c0_0] : memref<24x256xbf16, #tpu.memory_space<vmem>>, vector<24x256xbf16>
    %c0_1 = arith.constant 0 : index
    %c0_2 = arith.constant 0 : index
    %1 = vector.load %arg2[%c0_1, %c0_2] : memref<256x128xbf16, #tpu.memory_space<vmem>>, vector<256x128xbf16>
    %cst = arith.constant dense<0.000000e+00> : vector<24x128xf32>
    %2 = tpu.matmul %0, %1, %cst {dimension_numbers = #tpu.dot_dimension_numbers<[1], [0], [0], [1], [0, 0, 1, 1], [], []>} : vector<24x256xbf16>, vector<256x128xbf16>, vector<24x128xf32> -> vector<24x128xf32>
    %c0_3 = arith.constant 0 : index
    %c0_4 = arith.constant 0 : index
    %3 = vector.load %arg3[%c0_3, %c0_4] : memref<1x128xf32, #tpu.memory_space<vmem>>, vector<1x128xf32>
    %4 = vector.broadcast %3 : vector<1x128xf32> to vector<24x128xf32>
    %5 = arith.addf %2, %4 : vector<24x128xf32>
    %6 = arith.negf %5 : vector<24x128xf32>
    %7 = math.exp %6 : vector<24x128xf32>
    %cst_5 = arith.constant 1.000000e+00 : f32
    %8 = vector.broadcast %cst_5 : f32 to vector<24x128xf32>
    %9 = arith.addf %8, %7 : vector<24x128xf32>
    %10 = arith.divf %8, %9 : vector<24x128xf32>
    %c0_6 = arith.constant 0 : index
    %c0_7 = arith.constant 0 : index
    %11 = vector.load %arg6[%c0_6, %c0_7] : memref<24x128xf32, #tpu.memory_space<vmem>>, vector<24x128xf32>
    tpu.vector_store %arg6[%c0_6, %c0_7], %10 {strides = array<i32>} : memref<24x128xf32, #tpu.memory_space<vmem>>, vector<24x128xf32>,
    %12 = arith.truncf %10 : vector<24x128xf32> to vector<24x128xbf16>
    %c0_8 = arith.constant 0 : index
    %c0_9 = arith.constant 0 : index
    %13 = vector.load %arg4[%c0_8, %c0_9] : memref<128x256xbf16, #tpu.memory_space<vmem>>, vector<128x256xbf16>
    %cst_10 = arith.constant dense<0.000000e+00> : vector<24x256xf32>
    %14 = tpu.matmul %12, %13, %cst_10 {dimension_numbers = #tpu.dot_dimension_numbers<[1], [0], [0], [1], [0, 0, 1, 1], [], []>} : vector<24x128xbf16>, vector<128x256xbf16>, vector<24x256xf32> -> vector<24x256xf32>
    %c0_11 = arith.constant 0 : index
    %c0_12 = arith.constant 0 : index
    %15 = vector.load %arg5[%c0_11, %c0_12] : memref<1x256xf32, #tpu.memory_space<vmem>>, vector<1x256xf32>
    %16 = vector.broadcast %15 : vector<1x256xf32> to vector<24x256xf32>
    %17 = arith.addf %14, %16 : vector<24x256xf32>
    %18 = arith.negf %17 : vector<24x256xf32>
    %19 = math.exp %18 : vector<24x256xf32>
    %cst_13 = arith.constant 1.000000e+00 : f32
    %20 = vector.broadcast %cst_13 : f32 to vector<24x256xf32>
    %21 = arith.addf %20, %19 : vector<24x256xf32>
    %22 = arith.divf %20, %21 : vector<24x256xf32>
    %c0_14 = arith.constant 0 : index
    %c0_15 = arith.constant 0 : index
    %23 = vector.load %arg7[%c0_14, %c0_15] : memref<24x256xf32, #tpu.memory_space<vmem>>, vector<24x256xf32>
    tpu.vector_store %arg7[%c0_14, %c0_15], %22 {strides = array<i32>} : memref<24x256xf32, #tpu.memory_space<vmem>>, vector<24x256xf32>,
    return
  }
  func.func @transform_0(%arg0: i32) -> (i32, i32) {
    %c0_i32 = arith.constant 0 : i32
    %c0_i32_0 = arith.constant 0 : i32
    return %arg0, %c0_i32 : i32, i32
  }
  func.func @transform_1(%arg0: i32) -> (i32, i32) {
    %c0_i32 = arith.constant 0 : i32
    %c0_i32_0 = arith.constant 0 : i32
    %c0_i32_1 = arith.constant 0 : i32
    return %c0_i32, %c0_i32_0 : i32, i32
  }
  func.func @transform_2(%arg0: i32) -> (i32, i32) {
    %c0_i32 = arith.constant 0 : i32
    %c0_i32_0 = arith.constant 0 : i32
    %c0_i32_1 = arith.constant 0 : i32
    return %c0_i32, %c0_i32_0 : i32, i32
  }
  func.func @transform_3(%arg0: i32) -> (i32, i32) {
    %c0_i32 = arith.constant 0 : i32
    %c0_i32_0 = arith.constant 0 : i32
    %c0_i32_1 = arith.constant 0 : i32
    return %c0_i32, %c0_i32_0 : i32, i32
  }
  func.func @transform_4(%arg0: i32) -> (i32, i32) {
    %c0_i32 = arith.constant 0 : i32
    %c0_i32_0 = arith.constant 0 : i32
    %c0_i32_1 = arith.constant 0 : i32
    return %c0_i32, %c0_i32_0 : i32, i32
  }
  func.func @transform_5(%arg0: i32) -> (i32, i32) {
    %c0_i32 = arith.constant 0 : i32
    %c0_i32_0 = arith.constant 0 : i32
    return %arg0, %c0_i32 : i32, i32
  }
  func.func @transform_6(%arg0: i32) -> (i32, i32) {
    %c0_i32 = arith.constant 0 : i32
    %c0_i32_0 = arith.constant 0 : i32
    return %arg0, %c0_i32 : i32, i32
  }
}

</mosaic_0001>

<llo_original>
// kernel: simple_auto_encoder.1
$region0: #{simple_auto_encoder.1}
  #allocation0 [shape = 'u32[]', space=smem, size = 0x4, offset = 0x4, fixed_abs, tag = 'smem constant byte address 0x4 - core index']
  #allocation1 [shape = 'u32[144,128]{1,0:T(1,128)}', space=vmem, size = 0x12000, scoped, tag = 'internal scratch']
  %s0 = inlined_call_operand.vmem [shape: bf16[24,256], index: 0, kind: input, shape index: {}]
  %s1 = inlined_call_operand.vmem [shape: bf16[256,128], index: 1, kind: input, shape index: {}]
  %s2 = inlined_call_operand.vmem [shape: f32[1,128], index: 2, kind: input, shape index: {}]
  %s3 = inlined_call_operand.vmem [shape: bf16[128,256], index: 3, kind: input, shape index: {}]
  %s4 = inlined_call_operand.vmem [shape: f32[1,256], index: 4, kind: input, shape index: {}]
  %s5 = inlined_call_operand.hbm [shape: f32[24,128], index: 5, kind: output, shape index: {0}]
  %s6 = inlined_call_operand.hbm [shape: f32[24,256], index: 6, kind: output, shape index: {1}]
  %7 = xla_tuple %s5, %s6
  %s8 = sld [smem:[#allocation0]]
  $region38: #{simple_auto_encoder.1} parent=0
    _
  %s10 = ssub.s32 1, %s8
  %s11 = scalar_select 0, %s10, %s8
  $region1: #{simple_auto_encoder.1} parent=0
    #allocation2 [shape = 'u8[12288]{0}', space=vmem, size = 0x3000, scoped, tag = 'output window, operand 0, single buffered']
    #allocation3 [shape = 's32[1]{0}', space=sflag, size = 0x4, scoped, tag = 'scoped memory for simple_auto_encoder.1']
    #allocation4 [shape = 'u8[24576]{0}', space=vmem, size = 0x6000, scoped, tag = 'output window, operand 1, single buffered']
    #allocation5 [shape = 's32[1]{0}', space=sflag, size = 0x4, scoped, tag = 'scoped memory for simple_auto_encoder.1']
    %12 = vsyncpa [#allocation3], 0
    %13 = vsyncpa [#allocation5], 0
    // Predicated region
    $region2: #{simple_auto_encoder.1} parent=1 // pred_check
      _
    $region3: #{simple_auto_encoder.1} parent=1 // pred_check_branch
      %15 = sbr.rel (0) target = $region5
    $region4: #{simple_auto_encoder.1} parent=1 // pred_region
      _
    $region5: #{simple_auto_encoder.1} parent=1 // pred_fallthru
      _
    // Predicated region
    $region6: #{simple_auto_encoder.1} parent=1 // pred_check
      _
    $region7: #{simple_auto_encoder.1} parent=1 // pred_check_branch
      %17 = sbr.rel (0) target = $region9
    $region8: #{simple_auto_encoder.1} parent=1 // pred_region
      _
    $region9: #{simple_auto_encoder.1} parent=1 // pred_fallthru
      _
    // Predicated region
    $region10: #{simple_auto_encoder.1} parent=1 // pred_check
      _
    $region11: #{simple_auto_encoder.1} parent=1 // pred_check_branch
      %19 = sbr.rel (0) target = $region13
    $region12: #{simple_auto_encoder.1} parent=1 // pred_region
      _
    $region13: #{simple_auto_encoder.1} parent=1 // pred_fallthru
      _
    // Predicated region
    $region14: #{simple_auto_encoder.1} parent=1 // pred_check
      _
    $region15: #{simple_auto_encoder.1} parent=1 // pred_check_branch
      %21 = sbr.rel (0) target = $region17
    $region16: #{simple_auto_encoder.1} parent=1 // pred_region
      _
    $region17: #{simple_auto_encoder.1} parent=1 // pred_fallthru
      _
    // Predicated region
    $region18: #{simple_auto_encoder.1} parent=1 // pred_check
      _
    $region19: #{simple_auto_encoder.1} parent=1 // pred_check_branch
      %23 = sbr.rel (0) target = $region21
    $region20: #{simple_auto_encoder.1} parent=1 // pred_region
      _
    $region21: #{simple_auto_encoder.1} parent=1 // pred_fallthru
      _
    %v25 = vld [vmem:[%s0] sm:$0xff]
    %v26 = vld [vmem:[%s0 + $0x8] sm:$0xff]
    %v27 = vld [vmem:[%s0 + $0x10] sm:$0xff]
    %v28 = vld [vmem:[%s1] sm:$0xf]
    %v29 = vld [vmem:[%s1 + $0x4] sm:$0xf]
    %v30 = vld [vmem:[%s1 + $0x8] sm:$0xf]
    %v31 = vld [vmem:[%s1 + $0xc] sm:$0xf]
    %v32 = vld [vmem:[%s1 + $0x10] sm:$0xf]
    %v33 = vld [vmem:[%s1 + $0x14] sm:$0xf]
    %v34 = vld [vmem:[%s1 + $0x18] sm:$0xf]
    %v35 = vld [vmem:[%s1 + $0x1c] sm:$0xf]
    %v36 = vld [vmem:[%s1 + $0x20] sm:$0xf]
    %v37 = vld [vmem:[%s1 + $0x24] sm:$0xf]
    %v38 = vld [vmem:[%s1 + $0x28] sm:$0xf]
    %v39 = vld [vmem:[%s1 + $0x2c] sm:$0xf]
    %v40 = vld [vmem:[%s1 + $0x30] sm:$0xf]
    %v41 = vld [vmem:[%s1 + $0x34] sm:$0xf]
    %v42 = vld [vmem:[%s1 + $0x38] sm:$0xf]
    %v43 = vld [vmem:[%s1 + $0x3c] sm:$0xf]
    %v44 = vld [vmem:[%s1 + $0x40] sm:$0xf]
    %v45 = vld [vmem:[%s1 + $0x44] sm:$0xf]
    %v46 = vld [vmem:[%s1 + $0x48] sm:$0xf]
    %v47 = vld [vmem:[%s1 + $0x4c] sm:$0xf]
    %v48 = vld [vmem:[%s1 + $0x50] sm:$0xf]
    %v49 = vld [vmem:[%s1 + $0x54] sm:$0xf]
    %v50 = vld [vmem:[%s1 + $0x58] sm:$0xf]
    %v51 = vld [vmem:[%s1 + $0x5c] sm:$0xf]
    %v52 = vld [vmem:[%s1 + $0x60] sm:$0xf]
    %v53 = vld [vmem:[%s1 + $0x64] sm:$0xf]
    %v54 = vld [vmem:[%s1 + $0x68] sm:$0xf]
    %v55 = vld [vmem:[%s1 + $0x6c] sm:$0xf]
    %v56 = vld [vmem:[%s1 + $0x70] sm:$0xf]
    %v57 = vld [vmem:[%s1 + $0x74] sm:$0xf]
    %v58 = vld [vmem:[%s1 + $0x78] sm:$0xf]
    %v59 = vld [vmem:[%s1 + $0x7c] sm:$0xf]
    %v60 = vld [vmem:[%s2] sm:$0x1]
    %v62 = vlaneseq
    %v63 = vshrl.u32 %v62, 7
    %v64 = vsub.s32 0, %v63
    %v65 = vrot.slane %v60, %v64
    %v70 = vunpack.c.l.b16 %v25
    %v71 = vunpack.c.h.b16 %v25
    %v72 = vunpack.c.l.b16 %v26
    %v73 = vunpack.c.h.b16 %v26
    %v74 = vunpack.c.l.b16 %v27
    %v75 = vunpack.c.h.b16 %v27
    %v76 = vpack.c.b16 %v72, %v70
    %v77 = vpack.c.b16 %v73, %v71
    %v78 = vpack.c.b16 %v74, %v74
    %v79 = vpack.c.b16 %v75, %v75
    %v116 = vunpack.c.l.b16 %v28
    %v117 = vunpack.c.l.b16 %v29
    %v118 = vunpack.c.l.b16 %v30
    %v119 = vunpack.c.l.b16 %v31
    %v120 = vunpack.c.l.b16 %v32
    %v121 = vunpack.c.l.b16 %v33
    %v122 = vunpack.c.l.b16 %v34
    %v123 = vunpack.c.l.b16 %v35
    %v124 = vunpack.c.l.b16 %v36
    %v125 = vunpack.c.l.b16 %v37
    %v126 = vunpack.c.l.b16 %v38
    %v127 = vunpack.c.l.b16 %v39
    %v128 = vunpack.c.l.b16 %v40
    %v129 = vunpack.c.l.b16 %v41
    %v130 = vunpack.c.l.b16 %v42
    %v131 = vunpack.c.l.b16 %v43
    %v132 = vunpack.c.l.b16 %v44
    %v133 = vunpack.c.l.b16 %v45
    %v134 = vunpack.c.l.b16 %v46
    %v135 = vunpack.c.l.b16 %v47
    %v136 = vunpack.c.l.b16 %v48
    %v137 = vunpack.c.l.b16 %v49
    %v138 = vunpack.c.l.b16 %v50
    %v139 = vunpack.c.l.b16 %v51
    %v140 = vunpack.c.l.b16 %v52
    %v141 = vunpack.c.l.b16 %v53
    %v142 = vunpack.c.l.b16 %v54
    %v143 = vunpack.c.l.b16 %v55
    %v144 = vunpack.c.l.b16 %v56
    %v145 = vunpack.c.l.b16 %v57
    %v146 = vunpack.c.l.b16 %v58
    %v147 = vunpack.c.l.b16 %v59
    %v148 = vpack.c.b16 %v117, %v116
    %v149 = vpack.c.b16 %v119, %v118
    %v150 = vpack.c.b16 %v121, %v120
    %v151 = vpack.c.b16 %v123, %v122
    %v152 = vpack.c.b16 %v125, %v124
    %v153 = vpack.c.b16 %v127, %v126
    %v154 = vpack.c.b16 %v129, %v128
    %v155 = vpack.c.b16 %v131, %v130
    %v156 = vpack.c.b16 %v133, %v132
    %v157 = vpack.c.b16 %v135, %v134
    %v158 = vpack.c.b16 %v137, %v136
    %v159 = vpack.c.b16 %v139, %v138
    %v160 = vpack.c.b16 %v141, %v140
    %v161 = vpack.c.b16 %v143, %v142
    %v162 = vpack.c.b16 %v145, %v144
    %v163 = vpack.c.b16 %v147, %v146
    %180 = vmatprep.subr.bf16.mxu0 0
    %181 = vmatpush1.bf16.msra.mxu0 %v148
    %182 = vmatprep.subr.bf16.mxu0 0
    %183 = vmatpush1.bf16.msra.mxu0 %v149
    %184 = vmatprep.subr.bf16.mxu0 0
    %185 = vmatpush1.bf16.msra.mxu0 %v150
    %186 = vmatprep.subr.bf16.mxu0 0
    %187 = vmatpush1.bf16.msra.mxu0 %v151
    %188 = vmatprep.subr.bf16.mxu0 0
    %189 = vmatpush1.bf16.msra.mxu0 %v152
    %190 = vmatprep.subr.bf16.mxu0 0
    %191 = vmatpush1.bf16.msra.mxu0 %v153
    %192 = vmatprep.subr.bf16.mxu0 0
    %193 = vmatpush1.bf16.msra.mxu0 %v154
    %194 = vmatprep.subr.bf16.mxu0 0
    %195 = vmatpush1.bf16.msra.mxu0 %v155
    %196 = vmatprep.subr.bf16.mxu0 0
    %197 = vmatpush1.bf16.msra.mxu0 %v156
    %198 = vmatprep.subr.bf16.mxu0 0
    %199 = vmatpush1.bf16.msra.mxu0 %v157
    %200 = vmatprep.subr.bf16.mxu0 0
    %201 = vmatpush1.bf16.msra.mxu0 %v158
    %202 = vmatprep.subr.bf16.mxu0 0
    %203 = vmatpush1.bf16.msra.mxu0 %v159
    %204 = vmatprep.subr.bf16.mxu0 0
    %205 = vmatpush1.bf16.msra.mxu0 %v160
    %206 = vmatprep.subr.bf16.mxu0 0
    %207 = vmatpush1.bf16.msra.mxu0 %v161
    %208 = vmatprep.subr.bf16.mxu0 0
    %209 = vmatpush1.bf16.msra.mxu0 %v162
    %210 = vmatprep.subr.bf16.mxu0 0
    %211 = vmatpush1.bf16.msra.mxu0 %v163
    %212 = vmatprep.mubr.bf16.mxu0 %v77
    %213 = vmatmul.mubr.bf16.gmra.mrb[0].mxu0 %v76
    %v214 = vpop.f32.mrb[0].mxu0
    %v215 = vadd.f32 %v65, %v214
    %v216 = vpop.f32.mrb[0].mxu0
    %v217 = vpop.f32.mrb[0].mxu0
    %v218 = vadd.f32 %v65, %v217
    %v219 = vpop.f32.mrb[0].mxu0
    %220 = vmatprep.mubr.bf16.mxu0 %v79
    %221 = vmatmul.mubr.bf16.gmra.mrb[0].mxu0 %v78
    %v222 = vpop.f32.mrb[0].mxu0
    %v223 = vadd.f32 %v65, %v222
    %v224 = vpop.f32.mrb[0].mxu0
    %v225 = vpop.f32.mrb[0].mxu0
    %v226 = vpop.f32.mrb[0].mxu0
    %227 = vdwg.mxu0
    %v228 = vxor.u32 %v215, 2147483648
    %v229 = vxor.u32 %v218, 2147483648
    %v230 = vxor.u32 %v223, 2147483648
    %v231 = vmul.f32 %v228, 1.442695
    %v232 = vpow.pop %v231
    %v233 = vmul.f32 %v229, 1.442695
    %v234 = vpow.pop %v233
    %v235 = vmul.f32 %v230, 1.442695
    %v236 = vpow.pop %v235
    %v237 = vadd.f32 %v232, 1.0
    %v238 = vadd.f32 %v234, 1.0
    %v239 = vadd.f32 %v236, 1.0
    %v240 = vrcp.pop %v237
    %v241 = vmul.f32 1.0, %v240
    %v242 = vrcp.pop %v238
    %v243 = vmul.f32 1.0, %v242
    %v244 = vrcp.pop %v239
    %v245 = vmul.f32 1.0, %v244
    %246 = vst [vmem:[#allocation2] sm:$0xff] %v241
    %247 = vst [vmem:[#allocation2 + $0x8] sm:$0xff] %v243
    %248 = vst [vmem:[#allocation2 + $0x10] sm:$0xff] %v245
    %v249 = vpack.c.bf16 %v243, %v241
    %v250 = vpack.c.bf16 %v245, %v245
    %v251 = vld [vmem:[%s3] sm:$0xff]
    %v252 = vld [vmem:[%s3 + $0x8] sm:$0xff]
    %v253 = vld [vmem:[%s3 + $0x10] sm:$0xff]
    %v254 = vld [vmem:[%s3 + $0x18] sm:$0xff]
    %v255 = vld [vmem:[%s3 + $0x20] sm:$0xff]
    %v256 = vld [vmem:[%s3 + $0x28] sm:$0xff]
    %v257 = vld [vmem:[%s3 + $0x30] sm:$0xff]
    %v258 = vld [vmem:[%s3 + $0x38] sm:$0xff]
    %v259 = vld [vmem:[%s3 + $0x40] sm:$0xff]
    %v260 = vld [vmem:[%s3 + $0x48] sm:$0xff]
    %v261 = vld [vmem:[%s3 + $0x50] sm:$0xff]
    %v262 = vld [vmem:[%s3 + $0x58] sm:$0xff]
    %v263 = vld [vmem:[%s3 + $0x60] sm:$0xff]
    %v264 = vld [vmem:[%s3 + $0x68] sm:$0xff]
    %v265 = vld [vmem:[%s3 + $0x70] sm:$0xff]
    %v266 = vld [vmem:[%s3 + $0x78] sm:$0xff]
    %v267 = vld [vmem:[%s4] sm:$0x3]
    %v269 = vlaneseq
    %v270 = vshrl.u32 %v269, 7
    %v271 = vsub.s32 0, %v270
    %v272 = vrot.slane %v267, %v271
    %v273 = vlaneseq
    %v274 = vshrl.u32 %v273, 7
    %v275 = vsub.s32 1, %v274
    %v276 = vrot.slane %v267, %v275
    %v295 = vunpack.c.l.b16 %v251
    %v296 = vunpack.c.h.b16 %v251
    %v297 = vunpack.c.l.b16 %v252
    %v298 = vunpack.c.h.b16 %v252
    %v299 = vunpack.c.l.b16 %v253
    %v300 = vunpack.c.h.b16 %v253
    %v301 = vunpack.c.l.b16 %v254
    %v302 = vunpack.c.h.b16 %v254
    %v303 = vunpack.c.l.b16 %v255
    %v304 = vunpack.c.h.b16 %v255
    %v305 = vunpack.c.l.b16 %v256
    %v306 = vunpack.c.h.b16 %v256
    %v307 = vunpack.c.l.b16 %v257
    %v308 = vunpack.c.h.b16 %v257
    %v309 = vunpack.c.l.b16 %v258
    %v310 = vunpack.c.h.b16 %v258
    %v311 = vunpack.c.l.b16 %v259
    %v312 = vunpack.c.h.b16 %v259
    %v313 = vunpack.c.l.b16 %v260
    %v314 = vunpack.c.h.b16 %v260
    %v315 = vunpack.c.l.b16 %v261
    %v316 = vunpack.c.h.b16 %v261
    %v317 = vunpack.c.l.b16 %v262
    %v318 = vunpack.c.h.b16 %v262
    %v319 = vunpack.c.l.b16 %v263
    %v320 = vunpack.c.h.b16 %v263
    %v321 = vunpack.c.l.b16 %v264
    %v322 = vunpack.c.h.b16 %v264
    %v323 = vunpack.c.l.b16 %v265
    %v324 = vunpack.c.h.b16 %v265
    %v325 = vunpack.c.l.b16 %v266
    %v326 = vunpack.c.h.b16 %v266
    %v327 = vpack.c.b16 %v297, %v295
    %v328 = vpack.c.b16 %v298, %v296
    %v329 = vpack.c.b16 %v301, %v299
    %v330 = vpack.c.b16 %v302, %v300
    %v331 = vpack.c.b16 %v305, %v303
    %v332 = vpack.c.b16 %v306, %v304
    %v333 = vpack.c.b16 %v309, %v307
    %v334 = vpack.c.b16 %v310, %v308
    %v335 = vpack.c.b16 %v313, %v311
    %v336 = vpack.c.b16 %v314, %v312
    %v337 = vpack.c.b16 %v317, %v315
    %v338 = vpack.c.b16 %v318, %v316
    %v339 = vpack.c.b16 %v321, %v319
    %v340 = vpack.c.b16 %v322, %v320
    %v341 = vpack.c.b16 %v325, %v323
    %v342 = vpack.c.b16 %v326, %v324
    %359 = vmatprep.subr.bf16.mxu0 %v328
    %360 = vmatpush1.bf16.msra.mxu0 %v327
    %361 = vmatprep.subr.bf16.mxu0 %v330
    %362 = vmatpush1.bf16.msra.mxu0 %v329
    %363 = vmatprep.subr.bf16.mxu0 %v332
    %364 = vmatpush1.bf16.msra.mxu0 %v331
    %365 = vmatprep.subr.bf16.mxu0 %v334
    %366 = vmatpush1.bf16.msra.mxu0 %v333
    %367 = vmatprep.subr.bf16.mxu0 %v336
    %368 = vmatpush1.bf16.msra.mxu0 %v335
    %369 = vmatprep.subr.bf16.mxu0 %v338
    %370 = vmatpush1.bf16.msra.mxu0 %v337
    %371 = vmatprep.subr.bf16.mxu0 %v340
    %372 = vmatpush1.bf16.msra.mxu0 %v339
    %373 = vmatprep.subr.bf16.mxu0 %v342
    %374 = vmatpush1.bf16.msra.mxu0 %v341
    %375 = vmatprep.subr.bf16.mxu0 0
    %376 = vmatpush1.bf16.msra.mxu0 0
    %377 = vmatprep.subr.bf16.mxu0 0
    %378 = vmatpush1.bf16.msra.mxu0 0
    %379 = vmatprep.subr.bf16.mxu0 0
    %380 = vmatpush1.bf16.msra.mxu0 0
    %381 = vmatprep.subr.bf16.mxu0 0
    %382 = vmatpush1.bf16.msra.mxu0 0
    %383 = vmatprep.subr.bf16.mxu0 0
    %384 = vmatpush1.bf16.msra.mxu0 0
    %385 = vmatprep.subr.bf16.mxu0 0
    %386 = vmatpush1.bf16.msra.mxu0 0
    %387 = vmatprep.subr.bf16.mxu0 0
    %388 = vmatpush1.bf16.msra.mxu0 0
    %389 = vmatprep.subr.bf16.mxu0 0
    %390 = vmatpush1.bf16.msra.mxu0 0
    %391 = vmatprep.mubr.bf16.mxu0 0
    %392 = vmatmul.mubr.bf16.gmra.mrb[0].mxu0 %v249
    %v393 = vpop.f32.mrb[0].mxu0
    %v394 = vadd.f32 %v272, %v393
    %v395 = vpop.f32.mrb[0].mxu0
    %v396 = vadd.f32 %v276, %v395
    %v397 = vpop.f32.mrb[0].mxu0
    %v398 = vadd.f32 %v272, %v397
    %v399 = vpop.f32.mrb[0].mxu0
    %v400 = vadd.f32 %v276, %v399
    %401 = vmatprep.mubr.bf16.mxu0 0
    %402 = vmatmul.mubr.bf16.gmra.mrb[0].mxu0 %v250
    %v403 = vpop.f32.mrb[0].mxu0
    %v404 = vadd.f32 %v272, %v403
    %v405 = vpop.f32.mrb[0].mxu0
    %v406 = vadd.f32 %v276, %v405
    %v407 = vpop.f32.mrb[0].mxu0
    %v408 = vpop.f32.mrb[0].mxu0
    %409 = vdwg.mxu0
    %v410 = vxor.u32 %v394, 2147483648
    %v411 = vxor.u32 %v396, 2147483648
    %v412 = vxor.u32 %v398, 2147483648
    %v413 = vxor.u32 %v400, 2147483648
    %v414 = vxor.u32 %v404, 2147483648
    %v415 = vxor.u32 %v406, 2147483648
    %v416 = vmul.f32 %v410, 1.442695
    %v417 = vpow.pop %v416
    %v418 = vmul.f32 %v411, 1.442695
    %v419 = vpow.pop %v418
    %v420 = vmul.f32 %v412, 1.442695
    %v421 = vpow.pop %v420
    %v422 = vmul.f32 %v413, 1.442695
    %v423 = vpow.pop %v422
    %v424 = vmul.f32 %v414, 1.442695
    %v425 = vpow.pop %v424
    %v426 = vmul.f32 %v415, 1.442695
    %v427 = vpow.pop %v426
    %v428 = vadd.f32 %v417, 1.0
    %v429 = vadd.f32 %v419, 1.0
    %v430 = vadd.f32 %v421, 1.0
    %v431 = vadd.f32 %v423, 1.0
    %v432 = vadd.f32 %v425, 1.0
    %v433 = vadd.f32 %v427, 1.0
    %v434 = vrcp.pop %v428
    %v435 = vmul.f32 1.0, %v434
    %v436 = vrcp.pop %v429
    %v437 = vmul.f32 1.0, %v436
    %v438 = vrcp.pop %v430
    %v439 = vmul.f32 1.0, %v438
    %v440 = vrcp.pop %v431
    %v441 = vmul.f32 1.0, %v440
    %v442 = vrcp.pop %v432
    %v443 = vmul.f32 1.0, %v442
    %v444 = vrcp.pop %v433
    %v445 = vmul.f32 1.0, %v444
    %446 = vst [vmem:[#allocation4] sm:$0xff] %v435
    %447 = vst [vmem:[#allocation4 + $0x8] sm:$0xff] %v437
    %448 = vst [vmem:[#allocation4 + $0x10] sm:$0xff] %v439
    %449 = vst [vmem:[#allocation4 + $0x18] sm:$0xff] %v441
    %450 = vst [vmem:[#allocation4 + $0x20] sm:$0xff] %v443
    %451 = vst [vmem:[#allocation4 + $0x28] sm:$0xff] %v445
    // Predicated region
    $region22: #{simple_auto_encoder.1} parent=1 // pred_check
      _
    $region23: #{simple_auto_encoder.1} parent=1 // pred_check_branch
      %453 = sbr.rel (0) target = $region25
    $region24: #{simple_auto_encoder.1} parent=1 // pred_region
      %s455 = ssub.s32 384, 384
      %456 = vsyncadd [#allocation3], %s455
      %s457 = sshll.u32 [#allocation2], 4
      %s458 = int_to_ptr.vmem [resolvable:$true] %s457
      %463 = dma.vmem_to_hbm [thread:$0]  %s458, 384, %s5, [#allocation3], 128, 128, 8
    $region25: #{simple_auto_encoder.1} parent=1 // pred_fallthru
      _
    // Predicated region
    $region26: #{simple_auto_encoder.1} parent=1 // pred_check
      _
    $region27: #{simple_auto_encoder.1} parent=1 // pred_check_branch
      %465 = sbr.rel (0) target = $region29
    $region28: #{simple_auto_encoder.1} parent=1 // pred_region
      %s467 = ssub.s32 768, 768
      %468 = vsyncadd [#allocation5], %s467
      %s469 = sshll.u32 [#allocation4], 4
      %s470 = int_to_ptr.vmem [resolvable:$true] %s469
      %475 = dma.vmem_to_hbm [thread:$0]  %s470, 768, %s6, [#allocation5], 256, 256, 16
    $region29: #{simple_auto_encoder.1} parent=1 // pred_fallthru
      _
    // Predicated region
    $region30: #{simple_auto_encoder.1} parent=1 // pred_check
      _
    $region31: #{simple_auto_encoder.1} parent=1 // pred_check_branch
      %477 = sbr.rel (0) target = $region33
    $region32: #{simple_auto_encoder.1} parent=1 // pred_region
      %478 = dma.done [#allocation3], 384
    $region33: #{simple_auto_encoder.1} parent=1 // pred_fallthru
      _
    // Predicated region
    $region34: #{simple_auto_encoder.1} parent=1 // pred_check
      _
    $region35: #{simple_auto_encoder.1} parent=1 // pred_check_branch
      %480 = sbr.rel (0) target = $region37
    $region36: #{simple_auto_encoder.1} parent=1 // pred_region
      %481 = dma.done [#allocation5], 768
    $region37: #{simple_auto_encoder.1} parent=1 // pred_fallthru
      _
    %482 = vsyncpa [#allocation3], 1
    %483 = vsyncpa [#allocation5], 1

</llo_original>
